<compile_context>
chip_gen: v6e
topology: v6e:2x2x1
jax: 0.10.0
libtpu: 0.0.40
codegen_flags: <defaults>
</compile_context>

<pallas_src>
import functools

import jax
import jax.numpy as jnp
from jax.experimental import pallas as pl
from jax.experimental.pallas import tpu as pltpu

DIN = 2    # input features
H1 = 50    # hidden width
H2 = 50
DOUT = 1   # output features


def _softplus(x):
    # Matches torch.nn.Softplus(beta=1, threshold=20):
    #   x > 20    -> x (linear region)
    #   otherwise -> log(1 + exp(x))
    safe = jnp.minimum(x, 20.0)
    return jnp.where(x > 20.0, x, jnp.log1p(jnp.exp(safe)))


def mlp_kernel(xt_ref, w1_ref, b1_ref, w2_ref, b2_ref, w3_ref, b3_ref, o_ref,
               *, use_bf16):
    xt = xt_ref[...]                                              # (2, TB) f32

    # Layer 1: Linear(2, 50) + Tanh     -> (50, TB)
    z1 = jnp.dot(w1_ref[...], xt,
                 preferred_element_type=jnp.float32) + b1_ref[...]
    if use_bf16:
        h1 = jnp.tanh(z1.astype(jnp.bfloat16))                    # bf16 EUP
        w2 = w2_ref[...].astype(jnp.bfloat16)
    else:
        h1 = jnp.tanh(z1)
        w2 = w2_ref[...]

    # Layer 2: Linear(50, 50) + Tanh    -> (50, TB)
    z2 = jnp.dot(w2, h1, preferred_element_type=jnp.float32) + b2_ref[...]
    if use_bf16:
        h2 = jnp.tanh(z2.astype(jnp.bfloat16))
        w3 = w3_ref[...].astype(jnp.bfloat16)
    else:
        h2 = jnp.tanh(z2)
        w3 = w3_ref[...]

    # Layer 3: Linear(50, 1) + Softplus -> (1, TB) lane-dense output
    z3 = jnp.dot(w3, h2, preferred_element_type=jnp.float32) + b3_ref[...]
    o_ref[...] = _softplus(z3).astype(o_ref.dtype)


@functools.partial(jax.jit, static_argnames=("tb", "use_bf16"))
def speed_nn(x, w1, b1, w2, b2, w3, b3, *, tb=1024, use_bf16=False):
    """x: (N, 2) f32. Weights (fan_out, fan_in), biases (fan_out, 1).
    Returns (N, 1) f32, matching the PyTorch module's forward."""
    n = x.shape[0]
    n_pad = pl.cdiv(n, tb) * tb
    # Transpose once on the host side so batch sits on the lane axis; pad to a
    # tile multiple. (A (2, N) tile loads densely; a (N, 2) tile would be a
    # 2/128 masked-lane load inside the kernel.)
    xt = jnp.pad(x.T, ((0, 0), (0, n_pad - n)))                   # (2, n_pad)

    grid = (n_pad // tb,)
    cost = pl.CostEstimate(
        flops=2 * n_pad * (DIN * H1 + H1 * H2 + H2 * DOUT),
        transcendentals=n_pad * (H1 + H2 + DOUT),                 # tanh x2 + exp
        bytes_accessed=4 * n_pad * (DIN + DOUT)
                       + 4 * (H1 * DIN + H1 + H2 * H1 + H2 + DOUT * H2 + DOUT),
    )

    out_t = pl.pallas_call(
        functools.partial(mlp_kernel, use_bf16=use_bf16),
        out_shape=jax.ShapeDtypeStruct((DOUT, n_pad), jnp.float32),
        grid=grid,
        in_specs=[
            pl.BlockSpec((DIN, tb), lambda i: (0, i)),    # x^T tile (lane = batch)
            pl.BlockSpec((H1, DIN), lambda i: (0, 0)),    # w1 (resident in VMEM)
            pl.BlockSpec((H1, 1), lambda i: (0, 0)),      # b1
            pl.BlockSpec((H2, H1), lambda i: (0, 0)),     # w2
            pl.BlockSpec((H2, 1), lambda i: (0, 0)),      # b2
            pl.BlockSpec((DOUT, H2), lambda i: (0, 0)),   # w3
            pl.BlockSpec((DOUT, 1), lambda i: (0, 0)),    # b3
        ],
        out_specs=pl.BlockSpec((DOUT, tb), lambda i: (0, i)),     # lane-dense store
        compiler_params=pltpu.CompilerParams(
            dimension_semantics=("parallel",)),
        cost_estimate=cost,
    )(xt, w1, b1, w2, b2, w3, b3)

    # (1, n_pad) -> (n_pad, 1) is a contiguous reshape; drop padding rows.
    return out_t.reshape(n_pad, 1)[:n]


def init_params(key):
    """PyTorch-default-style Linear init: weights (fan_out, fan_in),
    biases (fan_out, 1), U(-1/sqrt(fan_in), 1/sqrt(fan_in))."""
    def linear(key, fan_in, fan_out):
        kw, kb = jax.random.split(key)
        bound = 1.0 / jnp.sqrt(fan_in)
        w = jax.random.uniform(kw, (fan_out, fan_in), jnp.float32, -bound, bound)
        b = jax.random.uniform(kb, (fan_out, 1), jnp.float32, -bound, bound)
        return w, b

    k1, k2, k3 = jax.random.split(key, 3)
    w1, b1 = linear(k1, DIN, H1)
    w2, b2 = linear(k2, H1, H2)
    w3, b3 = linear(k3, H2, DOUT)
    return w1, b1, w2, b2, w3, b3


def reference(x, w1, b1, w2, b2, w3, b3):
    h1 = jnp.tanh(x @ w1.T + b1.T)
    h2 = jnp.tanh(h1 @ w2.T + b2.T)
    z3 = h2 @ w3.T + b3.T
    return jnp.where(z3 > 20.0, z3, jnp.log1p(jnp.exp(jnp.minimum(z3, 20.0))))


if __name__ == "__main__":
    key = jax.random.PRNGKey(0)
    kx1, kx2, kp = jax.random.split(key, 3)
    params = init_params(kp)

    # bf16 tanh fast path only helps (and only changes numerics) on v6e/v7x.
    kind = jax.devices()[0].device_kind.lower()
    bf16_capable = ("v6" in kind) or ("v7" in kind)

    # --- Test 1: batch a multiple of the tile (grid length 2, megacore-splittable)
    n1 = 512
    x1 = jax.random.normal(kx1, (n1, DIN), dtype=jnp.float32)
    out1 = jax.block_until_ready(speed_nn(x1, *params, tb=256, use_bf16=False))
    ref1 = reference(x1, *params)
    assert out1.shape == (n1, 1), out1.shape
    assert jnp.allclose(out1, ref1, atol=1e-5, rtol=1e-5), (
        f"f32 max abs err {jnp.max(jnp.abs(out1 - ref1))}")

    # --- Test 2: ragged batch (exercises padding + slice-out of pad rows)
    n2 = 133
    x2 = jax.random.normal(kx2, (n2, DIN), dtype=jnp.float32)
    out2 = jax.block_until_ready(speed_nn(x2, *params, tb=256, use_bf16=False))
    ref2 = reference(x2, *params)
    assert out2.shape == (n2, 1), out2.shape
    assert jnp.allclose(out2, ref2, atol=1e-5, rtol=1e-5), (
        f"f32 ragged max abs err {jnp.max(jnp.abs(out2 - ref2))}")

    # --- Test 3: bf16-tanh fast path on v6e/v7x (looser tolerance)
    if bf16_capable:
        out3 = jax.block_until_ready(
            speed_nn(x1, *params, tb=256, use_bf16=True))
        assert out3.shape == (n1, 1), out3.shape
        assert jnp.allclose(out3, ref1, atol=5e-2, rtol=5e-2), (
            f"bf16 max abs err {jnp.max(jnp.abs(out3 - ref1))}")

    print("KERNEL_OK")
</pallas_src>

<mosaic_0001>
module attributes {stable_mosaic.version = 11 : i64} {
  func.func @mlp_kernel(%arg0: i32, %arg1: memref<2x256xf32, #tpu.memory_space<vmem>>, %arg2: memref<50x2xf32, #tpu.memory_space<vmem>>, %arg3: memref<50x1xf32, #tpu.memory_space<vmem>>, %arg4: memref<50x50xf32, #tpu.memory_space<vmem>>, %arg5: memref<50x1xf32, #tpu.memory_space<vmem>>, %arg6: memref<1x50xf32, #tpu.memory_space<vmem>>, %arg7: memref<1x1xf32, #tpu.memory_space<vmem>>, %arg8: memref<1x256xf32, #tpu.memory_space<vmem>>) attributes {dimension_semantics = [#tpu.dimension_semantics<parallel>], iteration_bounds = array<i64: 2>, scalar_prefetch = 0 : i64, scratch_operands = 0 : i64, tpu.core_type = #tpu.core_type<tc>, window_params = [{transform_indices = @transform_0, window_bounds = array<i64: 2, 256>}, {pipeline_mode = #tpu.pipeline_mode<synchronous>, transform_indices = @transform_1, window_bounds = array<i64: 50, 2>}, {pipeline_mode = #tpu.pipeline_mode<synchronous>, transform_indices = @transform_2, window_bounds = array<i64: 50, 1>}, {pipeline_mode = #tpu.pipeline_mode<synchronous>, transform_indices = @transform_3, window_bounds = array<i64: 50, 50>}, {pipeline_mode = #tpu.pipeline_mode<synchronous>, transform_indices = @transform_4, window_bounds = array<i64: 50, 1>}, {pipeline_mode = #tpu.pipeline_mode<synchronous>, transform_indices = @transform_5, window_bounds = array<i64: 1, 50>}, {pipeline_mode = #tpu.pipeline_mode<synchronous>, transform_indices = @transform_6, window_bounds = array<i64: 1, 1>}, {transform_indices = @transform_7, window_bounds = array<i64: 1, 256>}]} {
    %c0 = arith.constant 0 : index
    %c0_0 = arith.constant 0 : index
    %0 = vector.load %arg1[%c0, %c0_0] : memref<2x256xf32, #tpu.memory_space<vmem>>, vector<2x256xf32>
    %c0_1 = arith.constant 0 : index
    %c0_2 = arith.constant 0 : index
    %1 = vector.load %arg2[%c0_1, %c0_2] : memref<50x2xf32, #tpu.memory_space<vmem>>, vector<50x2xf32>
    %cst = arith.constant dense<0.000000e+00> : vector<50x256xf32>
    %2 = tpu.matmul %1, %0, %cst {dimension_numbers = #tpu.dot_dimension_numbers<[1], [0], [0], [1], [0, 0, 1, 1], [], []>} : vector<50x2xf32>, vector<2x256xf32>, vector<50x256xf32> -> vector<50x256xf32>
    %c0_3 = arith.constant 0 : index
    %c0_4 = arith.constant 0 : index
    %3 = vector.load %arg3[%c0_3, %c0_4] : memref<50x1xf32, #tpu.memory_space<vmem>>, vector<50x1xf32>
    %4 = vector.broadcast %3 : vector<50x1xf32> to vector<50x256xf32>
    %5 = arith.addf %2, %4 : vector<50x256xf32>
    %6 = math.tanh %5 : vector<50x256xf32>
    %c0_5 = arith.constant 0 : index
    %c0_6 = arith.constant 0 : index
    %7 = vector.load %arg4[%c0_5, %c0_6] : memref<50x50xf32, #tpu.memory_space<vmem>>, vector<50x50xf32>
    %cst_7 = arith.constant dense<0.000000e+00> : vector<50x256xf32>
    %8 = tpu.matmul %7, %6, %cst_7 {dimension_numbers = #tpu.dot_dimension_numbers<[1], [0], [0], [1], [0, 0, 1, 1], [], []>} : vector<50x50xf32>, vector<50x256xf32>, vector<50x256xf32> -> vector<50x256xf32>
    %c0_8 = arith.constant 0 : index
    %c0_9 = arith.constant 0 : index
    %9 = vector.load %arg5[%c0_8, %c0_9] : memref<50x1xf32, #tpu.memory_space<vmem>>, vector<50x1xf32>
    %10 = vector.broadcast %9 : vector<50x1xf32> to vector<50x256xf32>
    %11 = arith.addf %8, %10 : vector<50x256xf32>
    %12 = math.tanh %11 : vector<50x256xf32>
    %c0_10 = arith.constant 0 : index
    %c0_11 = arith.constant 0 : index
    %13 = vector.load %arg6[%c0_10, %c0_11] : memref<1x50xf32, #tpu.memory_space<vmem>>, vector<1x50xf32>
    %cst_12 = arith.constant dense<0.000000e+00> : vector<1x256xf32>
    %14 = tpu.matmul %13, %12, %cst_12 {dimension_numbers = #tpu.dot_dimension_numbers<[1], [0], [0], [1], [0, 0, 1, 1], [], []>} : vector<1x50xf32>, vector<50x256xf32>, vector<1x256xf32> -> vector<1x256xf32>
    %c0_13 = arith.constant 0 : index
    %c0_14 = arith.constant 0 : index
    %15 = vector.load %arg7[%c0_13, %c0_14] : memref<1x1xf32, #tpu.memory_space<vmem>>, vector<1x1xf32>
    %16 = vector.broadcast %15 : vector<1x1xf32> to vector<1x256xf32>
    %17 = arith.addf %14, %16 : vector<1x256xf32>
    %cst_15 = arith.constant 2.000000e+01 : f32
    %18 = vector.broadcast %cst_15 : f32 to vector<1x256xf32>
    %19 = arith.minimumf %17, %18 : vector<1x256xf32>
    %cst_16 = arith.constant 2.000000e+01 : f32
    %20 = vector.broadcast %cst_16 : f32 to vector<1x256xf32>
    %21 = arith.cmpf ogt, %17, %20 : vector<1x256xf32>
    %22 = math.exp %19 : vector<1x256xf32>
    %23 = math.log1p %22 : vector<1x256xf32>
    %24 = arith.select %21, %17, %23 : vector<1x256xi1>, vector<1x256xf32>
    %c0_17 = arith.constant 0 : index
    %c0_18 = arith.constant 0 : index
    %25 = vector.load %arg8[%c0_17, %c0_18] : memref<1x256xf32, #tpu.memory_space<vmem>>, vector<1x256xf32>
    tpu.vector_store %arg8[%c0_17, %c0_18], %24 {strides = array<i32>} : memref<1x256xf32, #tpu.memory_space<vmem>>, vector<1x256xf32>,
    return
  }
  func.func @transform_0(%arg0: i32) -> (i32, i32) {
    %c0_i32 = arith.constant 0 : i32
    %c0_i32_0 = arith.constant 0 : i32
    return %c0_i32, %arg0 : i32, i32
  }
  func.func @transform_1(%arg0: i32) -> (i32, i32) {
    %c0_i32 = arith.constant 0 : i32
    %c0_i32_0 = arith.constant 0 : i32
    %c0_i32_1 = arith.constant 0 : i32
    return %c0_i32, %c0_i32_0 : i32, i32
  }
  func.func @transform_2(%arg0: i32) -> (i32, i32) {
    %c0_i32 = arith.constant 0 : i32
    %c0_i32_0 = arith.constant 0 : i32
    %c0_i32_1 = arith.constant 0 : i32
    return %c0_i32, %c0_i32_0 : i32, i32
  }
  func.func @transform_3(%arg0: i32) -> (i32, i32) {
    %c0_i32 = arith.constant 0 : i32
    %c0_i32_0 = arith.constant 0 : i32
    %c0_i32_1 = arith.constant 0 : i32
    return %c0_i32, %c0_i32_0 : i32, i32
  }
  func.func @transform_4(%arg0: i32) -> (i32, i32) {
    %c0_i32 = arith.constant 0 : i32
    %c0_i32_0 = arith.constant 0 : i32
    %c0_i32_1 = arith.constant 0 : i32
    return %c0_i32, %c0_i32_0 : i32, i32
  }
  func.func @transform_5(%arg0: i32) -> (i32, i32) {
    %c0_i32 = arith.constant 0 : i32
    %c0_i32_0 = arith.constant 0 : i32
    %c0_i32_1 = arith.constant 0 : i32
    return %c0_i32, %c0_i32_0 : i32, i32
  }
  func.func @transform_6(%arg0: i32) -> (i32, i32) {
    %c0_i32 = arith.constant 0 : i32
    %c0_i32_0 = arith.constant 0 : i32
    %c0_i32_1 = arith.constant 0 : i32
    return %c0_i32, %c0_i32_0 : i32, i32
  }
  func.func @transform_7(%arg0: i32) -> (i32, i32) {
    %c0_i32 = arith.constant 0 : i32
    %c0_i32_0 = arith.constant 0 : i32
    return %c0_i32, %arg0 : i32, i32
  }
}

</mosaic_0001>

<llo_original>
// kernel: speed_nn.1
$region0: #{speed_nn.1}
  #allocation0 [shape = 'u32[]', space=smem, size = 0x4, offset = 0x4, fixed_abs, tag = 'smem constant byte address 0x4 - core index']
  #allocation1 [shape = 'u32[144,128]{1,0:T(1,128)}', space=vmem, size = 0x12000, scoped, tag = 'internal scratch']
  #allocation2 [shape = 'f32[1,1]{1,0:T(1,128)S(1)}', space=vmem, size = 0x200, scoped, tag = 'scoped memory for speed_nn.1']
  %s0 = inlined_call_operand.vmem [shape: f32[2,512], index: 0, kind: input, shape index: {}]
  %s1 = inlined_call_operand.vmem [shape: f32[50,2], index: 1, kind: input, shape index: {}]
  %s2 = inlined_call_operand.vmem [shape: f32[50,1], index: 2, kind: input, shape index: {}]
  %s3 = inlined_call_operand.vmem [shape: f32[50,50], index: 3, kind: input, shape index: {}]
  %s4 = inlined_call_operand.vmem [shape: f32[50,1], index: 4, kind: input, shape index: {}]
  %s5 = inlined_call_operand.vmem [shape: f32[1,50], index: 5, kind: input, shape index: {}]
  %s6 = inlined_call_operand.<no memory space> [shape: f32[1,1], index: 6, kind: input, shape index: {}]
  %s7 = inlined_call_operand.hbm [shape: f32[1,512], index: 7, kind: output, shape index: {}]
  %s8 = sld [smem:[#allocation0]]
  $region61: #{speed_nn.1} parent=0
    _
  %s10 = ssub.s32 1, %s8
  %s11 = scalar_select 0, %s10, %s8
  %v12 = vstv %s6
  %13 = vst [vmem:[#allocation2] sm:$0x1] %v12
  $region1: #{speed_nn.1} parent=0
    #allocation3 [shape = 'u8[2048]{0}', space=vmem, size = 0x800, scoped, tag = 'output window, operand 0']
    #allocation4 [shape = 's32[2]{0}', space=sflag, size = 0x8, scoped, tag = 'scoped memory for speed_nn.1']
    %14 = vsyncpa [#allocation4], 0
    %s15 = scalar_lea.sflag [#allocation4], 1
    %16 = vsyncpa %s15, 0
    loop: start=0, step=1, limit=4
    $region2: #{speed_nn.1} parent=1 // loop_pre_header
      _
    $region3: #{speed_nn.1} parent=1 // loop_header
      %s18 = sphi 0, %s22
      %p19 = scmp.ge.s32.totalorder %s18, 4
      %s28 = sphi 0, %s30
      %s31 = sphi 0, %s28
      %s32 = sphi 0, %s31
      %s48 = sphi 0, %s32
      %s52 = sphi 0, %s52
      %s54 = sphi 0, %s52
      %s55 = sphi 0, %s54
      %s69 = sphi 0, %s55
      %s73 = sphi 0, %s73
      %s75 = sphi 0, %s73
      %s76 = sphi 0, %s75
      %s90 = sphi 0, %s76
      %s94 = sphi 0, %s94
      %s96 = sphi 0, %s94
      %s97 = sphi 0, %s96
      %s111 = sphi 0, %s97
      %s115 = sphi 0, %s115
      %s117 = sphi 0, %s115
      %s118 = sphi 0, %s117
      %s132 = sphi 0, %s118
      %s136 = sphi 0, %s136
      %s138 = sphi 0, %s136
      %s139 = sphi 0, %s138
      %s153 = sphi 0, %s139
      %s157 = sphi 0, %s157
      %s159 = sphi 0, %s157
      %s160 = sphi 0, %s159
      %s174 = sphi 0, %s160
      %s180 = sphi 0, %s182
      %s183 = sphi 0, %s180
      %s184 = sphi 0, %s183
      %s200 = sphi 0, %s184
    $region4: #{speed_nn.1} parent=1 // loop_header_branch
      %21 = sbr.rel (%p19) target = $region8
    $region5: #{speed_nn.1} parent=1 // loop_body
      %s23 = ssub.s32 %s18, 1
      %s24 = ssub.s32 %s18, 2
      %s25 = sadd.s32 %s18, 1
      %s26 = ssub.s32 %s18, %s25
      %p27 = scmp.eq.s32.totalorder %s26, 0
      %s29 = sadd.s32 %s28, 1
      %s30 = scalar_select %p27, %s28, %s29
      %p33 = pneg %p27
      %p34 = scmp.eq.s32.totalorder %s18, 1
      %p35 = por %p33, %p34
      %p36 = scmp.ne.s32.totalorder %s28, %s31
      %p37 = scmp.eq.s32.totalorder %s18, 0
      %p38 = por %p36, %p37
      %p39 = scmp.ne.s32.totalorder %s28, %s31
      %p40 = scmp.eq.s32.totalorder %s23, 1
      %p41 = por %p39, %p40
      %p42 = scmp.ne.s32.totalorder %s31, %s32
      %p43 = scmp.eq.s32.totalorder %s23, 0
      %p44 = por %p42, %p43
      %p45 = scmp.ne.s32.totalorder %s31, %s32
      %p46 = scmp.eq.s32.totalorder %s24, 1
      %p47 = por %p45, %p46
      %p49 = scmp.ne.s32.totalorder %s32, %s48
      %p50 = scmp.eq.s32.totalorder %s24, 0
      %p51 = por %p49, %p50
      %s53 = sadd.s32 %s52, 1
      %p56 = scmp.eq.s32.totalorder %s18, 1
      %p57 = scmp.ne.s32.totalorder %s52, %s54
      %p58 = scmp.eq.s32.totalorder %s18, 0
      %p59 = por %p57, %p58
      %p60 = scmp.ne.s32.totalorder %s52, %s54
      %p61 = scmp.eq.s32.totalorder %s23, 1
      %p62 = por %p60, %p61
      %p63 = scmp.ne.s32.totalorder %s54, %s55
      %p64 = scmp.eq.s32.totalorder %s23, 0
      %p65 = por %p63, %p64
      %p66 = scmp.ne.s32.totalorder %s54, %s55
      %p67 = scmp.eq.s32.totalorder %s24, 1
      %p68 = por %p66, %p67
      %p70 = scmp.ne.s32.totalorder %s55, %s69
      %p71 = scmp.eq.s32.totalorder %s24, 0
      %p72 = por %p70, %p71
      %s74 = sadd.s32 %s73, 1
      %p77 = scmp.eq.s32.totalorder %s18, 1
      %p78 = scmp.ne.s32.totalorder %s73, %s75
      %p79 = scmp.eq.s32.totalorder %s18, 0
      %p80 = por %p78, %p79
      %p81 = scmp.ne.s32.totalorder %s73, %s75
      %p82 = scmp.eq.s32.totalorder %s23, 1
      %p83 = por %p81, %p82
      %p84 = scmp.ne.s32.totalorder %s75, %s76
      %p85 = scmp.eq.s32.totalorder %s23, 0
      %p86 = por %p84, %p85
      %p87 = scmp.ne.s32.totalorder %s75, %s76
      %p88 = scmp.eq.s32.totalorder %s24, 1
      %p89 = por %p87, %p88
      %p91 = scmp.ne.s32.totalorder %s76, %s90
      %p92 = scmp.eq.s32.totalorder %s24, 0
      %p93 = por %p91, %p92
      %s95 = sadd.s32 %s94, 1
      %p98 = scmp.eq.s32.totalorder %s18, 1
      %p99 = scmp.ne.s32.totalorder %s94, %s96
      %p100 = scmp.eq.s32.totalorder %s18, 0
      %p101 = por %p99, %p100
      %p102 = scmp.ne.s32.totalorder %s94, %s96
      %p103 = scmp.eq.s32.totalorder %s23, 1
      %p104 = por %p102, %p103
      %p105 = scmp.ne.s32.totalorder %s96, %s97
      %p106 = scmp.eq.s32.totalorder %s23, 0
      %p107 = por %p105, %p106
      %p108 = scmp.ne.s32.totalorder %s96, %s97
      %p109 = scmp.eq.s32.totalorder %s24, 1
      %p110 = por %p108, %p109
      %p112 = scmp.ne.s32.totalorder %s97, %s111
      %p113 = scmp.eq.s32.totalorder %s24, 0
      %p114 = por %p112, %p113
      %s116 = sadd.s32 %s115, 1
      %p119 = scmp.eq.s32.totalorder %s18, 1
      %p120 = scmp.ne.s32.totalorder %s115, %s117
      %p121 = scmp.eq.s32.totalorder %s18, 0
      %p122 = por %p120, %p121
      %p123 = scmp.ne.s32.totalorder %s115, %s117
      %p124 = scmp.eq.s32.totalorder %s23, 1
      %p125 = por %p123, %p124
      %p126 = scmp.ne.s32.totalorder %s117, %s118
      %p127 = scmp.eq.s32.totalorder %s23, 0
      %p128 = por %p126, %p127
      %p129 = scmp.ne.s32.totalorder %s117, %s118
      %p130 = scmp.eq.s32.totalorder %s24, 1
      %p131 = por %p129, %p130
      %p133 = scmp.ne.s32.totalorder %s118, %s132
      %p134 = scmp.eq.s32.totalorder %s24, 0
      %p135 = por %p133, %p134
      %s137 = sadd.s32 %s136, 1
      %p140 = scmp.eq.s32.totalorder %s18, 1
      %p141 = scmp.ne.s32.totalorder %s136, %s138
      %p142 = scmp.eq.s32.totalorder %s18, 0
      %p143 = por %p141, %p142
      %p144 = scmp.ne.s32.totalorder %s136, %s138
      %p145 = scmp.eq.s32.totalorder %s23, 1
      %p146 = por %p144, %p145
      %p147 = scmp.ne.s32.totalorder %s138, %s139
      %p148 = scmp.eq.s32.totalorder %s23, 0
      %p149 = por %p147, %p148
      %p150 = scmp.ne.s32.totalorder %s138, %s139
      %p151 = scmp.eq.s32.totalorder %s24, 1
      %p152 = por %p150, %p151
      %p154 = scmp.ne.s32.totalorder %s139, %s153
      %p155 = scmp.eq.s32.totalorder %s24, 0
      %p156 = por %p154, %p155
      %s158 = sadd.s32 %s157, 1
      %p161 = scmp.eq.s32.totalorder %s18, 1
      %p162 = scmp.ne.s32.totalorder %s157, %s159
      %p163 = scmp.eq.s32.totalorder %s18, 0
      %p164 = por %p162, %p163
      %p165 = scmp.ne.s32.totalorder %s157, %s159
      %p166 = scmp.eq.s32.totalorder %s23, 1
      %p167 = por %p165, %p166
      %p168 = scmp.ne.s32.totalorder %s159, %s160
      %p169 = scmp.eq.s32.totalorder %s23, 0
      %p170 = por %p168, %p169
      %p171 = scmp.ne.s32.totalorder %s159, %s160
      %p172 = scmp.eq.s32.totalorder %s24, 1
      %p173 = por %p171, %p172
      %p175 = scmp.ne.s32.totalorder %s160, %s174
      %p176 = scmp.eq.s32.totalorder %s24, 0
      %p177 = por %p175, %p176
      %s178 = ssub.s32 %s18, %s25
      %p179 = scmp.eq.s32.totalorder %s178, 0
      %s181 = sadd.s32 %s180, 1
      %s182 = scalar_select %p179, %s180, %s181
      %p185 = pneg %p179
      %p186 = scmp.eq.s32.totalorder %s18, 1
      %p187 = por %p185, %p186
      %p188 = scmp.ne.s32.totalorder %s180, %s183
      %p189 = scmp.eq.s32.totalorder %s18, 0
      %p190 = por %p188, %p189
      %p191 = scmp.ne.s32.totalorder %s180, %s183
      %p192 = scmp.eq.s32.totalorder %s23, 1
      %p193 = por %p191, %p192
      %p194 = scmp.ne.s32.totalorder %s183, %s184
      %p195 = scmp.eq.s32.totalorder %s23, 0
      %p196 = por %p194, %p195
      %p197 = scmp.ne.s32.totalorder %s183, %s184
      %p198 = scmp.eq.s32.totalorder %s24, 1
      %p199 = por %p197, %p198
      %p201 = scmp.ne.s32.totalorder %s184, %s200
      %p202 = scmp.eq.s32.totalorder %s24, 0
      %p203 = por %p201, %p202
      %p204 = scmp.le.s32.totalorder 1, %s18
      %p205 = scmp.lt.s32.totalorder %s18, 3
      %p206 = pnand %p204, %p205
      %p207 = pneg %p206
      // Predicated region
      $region9: #{speed_nn.1} parent=5 // pred_check
        _
      $region10: #{speed_nn.1} parent=5 // pred_check_branch
        %209 = sbr.rel (%p206) target = $region12
      $region11: #{speed_nn.1} parent=5 // pred_region
        %s210 = ssub.s32 %s18, 1
        // Predicated region
        $region13: #{speed_nn.1} parent=11 // pred_check
          %p211 = pneg %p65
        $region14: #{speed_nn.1} parent=11 // pred_check_branch
          %213 = sbr.rel (%p211) target = $region16
        $region15: #{speed_nn.1} parent=11 // pred_region
          _
        $region16: #{speed_nn.1} parent=11 // pred_fallthru
          _
        // Predicated region
        $region17: #{speed_nn.1} parent=11 // pred_check
          %p214 = pneg %p86
        $region18: #{speed_nn.1} parent=11 // pred_check_branch
          %216 = sbr.rel (%p214) target = $region20
        $region19: #{speed_nn.1} parent=11 // pred_region
          _
        $region20: #{speed_nn.1} parent=11 // pred_fallthru
          _
        // Predicated region
        $region21: #{speed_nn.1} parent=11 // pred_check
          %p217 = pneg %p107
        $region22: #{speed_nn.1} parent=11 // pred_check_branch
          %219 = sbr.rel (%p217) target = $region24
        $region23: #{speed_nn.1} parent=11 // pred_region
          _
        $region24: #{speed_nn.1} parent=11 // pred_fallthru
          _
        // Predicated region
        $region25: #{speed_nn.1} parent=11 // pred_check
          %p220 = pneg %p128
        $region26: #{speed_nn.1} parent=11 // pred_check_branch
          %222 = sbr.rel (%p220) target = $region28
        $region27: #{speed_nn.1} parent=11 // pred_region
          _
        $region28: #{speed_nn.1} parent=11 // pred_fallthru
          _
        // Predicated region
        $region29: #{speed_nn.1} parent=11 // pred_check
          %p223 = pneg %p149
        $region30: #{speed_nn.1} parent=11 // pred_check_branch
          %225 = sbr.rel (%p223) target = $region32
        $region31: #{speed_nn.1} parent=11 // pred_region
          _
        $region32: #{speed_nn.1} parent=11 // pred_fallthru
          _
        // Predicated region
        $region33: #{speed_nn.1} parent=11 // pred_check
          %p226 = pneg %p170
        $region34: #{speed_nn.1} parent=11 // pred_check_branch
          %228 = sbr.rel (%p226) target = $region36
        $region35: #{speed_nn.1} parent=11 // pred_region
          _
        $region36: #{speed_nn.1} parent=11 // pred_fallthru
          _
      $region12: #{speed_nn.1} parent=5 // pred_fallthru
        _
      %p229 = scmp.lt.s32.totalorder %s18, 2
      // Predicated region
      $region37: #{speed_nn.1} parent=5 // pred_check
        %p230 = pneg %p229
      $region38: #{speed_nn.1} parent=5 // pred_check_branch
        %232 = sbr.rel (%p230) target = $region40
      $region39: #{speed_nn.1} parent=5 // pred_region
        // Predicated region
        $region41: #{speed_nn.1} parent=39 // pred_check
          %p233 = pneg %p38
        $region42: #{speed_nn.1} parent=39 // pred_check_branch
          %235 = sbr.rel (%p233) target = $region44
        $region43: #{speed_nn.1} parent=39 // pred_region
          %s236 = smul.u32 2, %s18
          %p237 = scmp.lt.s32.totalorder %s236, 3
          %s238 = scalar_select %p237, %s236, 3
          %s239 = smul.addr %s238, 2
          %s240 = scalar_lea.vmem %s0, %s239
          %s241 = smul.u32 2, %s18
        $region44: #{speed_nn.1} parent=39 // pred_fallthru
          _
      $region40: #{speed_nn.1} parent=5 // pred_fallthru
        _
      %p242 = scmp.le.s32.totalorder 1, %s18
      %p243 = scmp.lt.s32.totalorder %s18, 3
      %p244 = pnand %p242, %p243
      %p245 = pneg %p244
      // Predicated region
      $region45: #{speed_nn.1} parent=5 // pred_check
        _
      $region46: #{speed_nn.1} parent=5 // pred_check_branch
        %247 = sbr.rel (%p244) target = $region48
      $region47: #{speed_nn.1} parent=5 // pred_region
        %s248 = ssub.s32 %s18, 1
        %s249 = smul.u32 2, %s23
        %p250 = scmp.lt.s32.totalorder %s249, 3
        %s251 = scalar_select %p250, %s249, 3
        %s252 = smul.addr %s251, 2
        %s253 = scalar_lea.vmem %s0, %s252
        %p254 = pneg %p44
        %p255 = pneg %p41
        %p256 = pneg %p65
        %p257 = pneg %p62
        %p258 = pneg %p86
        %p259 = pneg %p83
        %p260 = pneg %p107
        %p261 = pneg %p104
        %p262 = pneg %p128
        %p263 = pneg %p125
        %p264 = pneg %p149
        %p265 = pneg %p146
        %p266 = pneg %p170
        %p267 = pneg %p167
        %p268 = pneg %p196
        %p269 = pneg %p193
        %s270 = sand.u32 %s183, 1
        %s271 = scalar_lea.sflag [#allocation4], %s270
        %s272 = sand.u32 %s183, 1
        %s273 = smul.addr %s272, 2
        %s274 = scalar_lea.vmem [#allocation3], %s273
        %s275 = smul.u32 2, %s23
        %p276 = scmp.lt.s32.totalorder %s275, 3
        %s277 = scalar_select %p276, %s275, 3
        %s278 = smul.addr %s277, 2
        %s279 = scalar_lea.vmem %s0, %s278
        %s280 = smul.u32 2, %s23
        %s281 = smul.u32 2, %s23
        %v282 = vld [vmem:[%s279] sm:$0xf]
        %v283 = vld [vmem:[%s1] sm:$0xff]
        %v284 = vld [vmem:[%s1 + $0x8] sm:$0xff]
        %v285 = vld [vmem:[%s1 + $0x10] sm:$0xff]
        %v286 = vld [vmem:[%s1 + $0x18] sm:$0xff]
        %v287 = vld [vmem:[%s1 + $0x20] sm:$0xff]
        %v288 = vld [vmem:[%s1 + $0x28] sm:$0xff]
        %v289 = vld [vmem:[%s1 + $0x30] sm:$0x3]
        %v290 = vld [vmem:[%s2] sm:$0xff]
        %v291 = vld [vmem:[%s2 + $0x8] sm:$0xff]
        %v292 = vld [vmem:[%s2 + $0x10] sm:$0xff]
        %v293 = vld [vmem:[%s2 + $0x18] sm:$0xff]
        %v294 = vld [vmem:[%s2 + $0x20] sm:$0xff]
        %v295 = vld [vmem:[%s2 + $0x28] sm:$0xff]
        %v296 = vld [vmem:[%s2 + $0x30] sm:$0x3]
        %298 = vset.pattern.permute.xlu0 0
        %299 = vperm.xlu0 %298, %v290
        %v300 = vpop.permute.xlu0 %299
        %303 = vset.pattern.permute.xlu0 0
        %304 = vperm.xlu0 %303, %v291
        %v305 = vpop.permute.xlu0 %304
        %308 = vset.pattern.permute.xlu0 0
        %309 = vperm.xlu0 %308, %v292
        %v310 = vpop.permute.xlu0 %309
        %313 = vset.pattern.permute.xlu0 0
        %314 = vperm.xlu0 %313, %v293
        %v315 = vpop.permute.xlu0 %314
        %318 = vset.pattern.permute.xlu0 0
        %319 = vperm.xlu0 %318, %v294
        %v320 = vpop.permute.xlu0 %319
        %323 = vset.pattern.permute.xlu0 0
        %324 = vperm.xlu0 %323, %v295
        %v325 = vpop.permute.xlu0 %324
        %328 = vset.pattern.permute.xlu0 0
        %329 = vperm.xlu0 %328, %v296
        %v330 = vpop.permute.xlu0 %329
        %v334 = vunpack.c.l.s4 1983009808
        %v335 = vunpack.c.0.s8 %v334
        %v336 = vlaneseq
        %v337 = vshrl.u32 %v336, 7
        %v338 = vsub.s32 %v335, %v337
        %v339 = vrot.slane %v282, %v338
        %v340 = vcombine.high %v339, %v339
        %vm341 = vcmask 15360
        %v343 = vsel %vm341, %v283, 0
        %v346 = vsel %vm341, %v284, 0
        %v349 = vsel %vm341, %v285, 0
        %v352 = vsel %vm341, %v286, 0
        %v355 = vsel %vm341, %v287, 0
        %v358 = vsel %vm341, %v288, 0
        %v361 = vsel %vm341, %v289, 0
        %vm363 = vcmask 1041408
        %v364 = vsel %vm363, %v339, 0
        %v366 = vsel %vm363, %v340, 0
        %368 = vmatprep.subr.mxu0 0.0
        %369 = vmatpush1.msra.mxu0 0.0
        %370 = vmatprep.subr.mxu0 0.0
        %371 = vmatpush1.msra.mxu0 0.0
        %372 = vmatprep.subr.mxu0 0.0
        %373 = vmatpush1.msra.mxu0 0.0
        %374 = vmatprep.subr.mxu0 0.0
        %375 = vmatpush1.msra.mxu0 0.0
        %376 = vmatprep.subr.mxu0 0.0
        %377 = vmatpush1.msra.mxu0 0.0
        %378 = vmatprep.subr.mxu0 0.0
        %379 = vmatpush1.msra.mxu0 0.0
        %380 = vmatprep.subr.mxu0 0.0
        %381 = vmatpush1.msra.mxu0 0.0
        %382 = vmatprep.subr.mxu0 0.0
        %383 = vmatpush1.msra.mxu0 0.0
        %384 = vmatprep.subr.mxu0 0.0
        %385 = vmatpush1.msra.mxu0 0.0
        %386 = vmatprep.subr.mxu0 0.0
        %387 = vmatpush1.msra.mxu0 0.0
        %388 = vmatprep.subr.mxu0 0.0
        %389 = vmatpush1.msra.mxu0 0.0
        %390 = vmatprep.subr.mxu0 0.0
        %391 = vmatpush1.msra.mxu0 0.0
        %392 = vmatprep.subr.mxu0 0.0
        %393 = vmatpush1.msra.mxu0 0.0
        %394 = vmatprep.subr.mxu0 0.0
        %395 = vmatpush1.msra.mxu0 0.0
        %396 = vmatprep.subr.mxu0 0.0
        %397 = vmatpush1.msra.mxu0 0.0
        %398 = vmatprep.subr.mxu0 %v366
        %399 = vmatpush1.msra.mxu0 %v364
        %400 = vmatprep.subr.mxu0 0.0
        %401 = vmatpush2.msra.mxu0 0.0
        %402 = vmatprep.subr.mxu0 0.0
        %403 = vmatpush2.msra.mxu0 0.0
        %404 = vmatprep.subr.mxu0 0.0
        %405 = vmatpush2.msra.mxu0 0.0
        %406 = vmatprep.subr.mxu0 0.0
        %407 = vmatpush2.msra.mxu0 0.0
        %408 = vmatprep.subr.mxu0 0.0
        %409 = vmatpush2.msra.mxu0 0.0
        %410 = vmatprep.subr.mxu0 0.0
        %411 = vmatpush2.msra.mxu0 0.0
        %412 = vmatprep.subr.mxu0 0.0
        %413 = vmatpush2.msra.mxu0 0.0
        %414 = vmatprep.subr.mxu0 0.0
        %415 = vmatpush2.msra.mxu0 0.0
        %416 = vmatprep.subr.mxu0 0.0
        %417 = vmatpush2.msra.mxu0 0.0
        %418 = vmatprep.subr.mxu0 0.0
        %419 = vmatpush2.msra.mxu0 0.0
        %420 = vmatprep.subr.mxu0 0.0
        %421 = vmatpush2.msra.mxu0 0.0
        %422 = vmatprep.subr.mxu0 0.0
        %423 = vmatpush2.msra.mxu0 0.0
        %424 = vmatprep.subr.mxu0 0.0
        %425 = vmatpush2.msra.mxu0 0.0
        %426 = vmatprep.subr.mxu0 0.0
        %427 = vmatpush2.msra.mxu0 0.0
        %428 = vmatprep.subr.mxu0 0.0
        %429 = vmatpush2.msra.mxu0 0.0
        %430 = vmatprep.subr.mxu0 0.0
        %431 = vmatpush2.msra.mxu0 0.0
        %432 = vmatprep.mubr.f32.mxu0 0.0
        %433 = vmatmul.mubr.f32.gmra.mxu0 %v343
        %v434 = vpop.f32.mrf.mxu0
        %v435 = vadd.f32 %v300, %v434
        %v436 = vpop.f32.mrf.mxu0
        %v437 = vadd.f32 %v300, %v436
        %438 = vmatprep.mubr.f32.mxu0 0.0
        %439 = vmatmul.mubr.f32.gmra.mxu0 %v346
        %v440 = vpop.f32.mrf.mxu0
        %v441 = vadd.f32 %v305, %v440
        %v442 = vpop.f32.mrf.mxu0
        %v443 = vadd.f32 %v305, %v442
        %444 = vmatprep.mubr.f32.mxu0 0.0
        %445 = vmatmul.mubr.f32.gmra.mxu0 %v349
        %v446 = vpop.f32.mrf.mxu0
        %v447 = vadd.f32 %v310, %v446
        %v448 = vpop.f32.mrf.mxu0
        %v449 = vadd.f32 %v310, %v448
        %450 = vmatprep.mubr.f32.mxu0 0.0
        %451 = vmatmul.mubr.f32.gmra.mxu0 %v352
        %v452 = vpop.f32.mrf.mxu0
        %v453 = vadd.f32 %v315, %v452
        %v454 = vpop.f32.mrf.mxu0
        %v455 = vadd.f32 %v315, %v454
        %456 = vmatprep.mubr.f32.mxu0 0.0
        %457 = vmatmul.mubr.f32.gmra.mxu0 %v355
        %v458 = vpop.f32.mrf.mxu0
        %v459 = vadd.f32 %v320, %v458
        %v460 = vpop.f32.mrf.mxu0
        %v461 = vadd.f32 %v320, %v460
        %462 = vmatprep.mubr.f32.mxu0 0.0
        %463 = vmatmul.mubr.f32.gmra.mxu0 %v358
        %v464 = vpop.f32.mrf.mxu0
        %v465 = vadd.f32 %v325, %v464
        %v466 = vpop.f32.mrf.mxu0
        %v467 = vadd.f32 %v325, %v466
        %468 = vmatprep.mubr.f32.mxu0 0.0
        %469 = vmatmul.mubr.f32.gmra.mxu0 %v361
        %v470 = vpop.f32.mrf.mxu0
        %v471 = vadd.f32 %v330, %v470
        %v472 = vpop.f32.mrf.mxu0
        %v473 = vadd.f32 %v330, %v472
        %474 = vdwg.mxu0
        %v475 = vtanh.pop %v435
        %v476 = vtanh.pop %v437
        %v477 = vtanh.pop %v441
        %v478 = vtanh.pop %v443
        %v479 = vtanh.pop %v447
        %v480 = vtanh.pop %v449
        %v481 = vtanh.pop %v453
        %v482 = vtanh.pop %v455
        %v483 = vtanh.pop %v459
        %v484 = vtanh.pop %v461
        %v485 = vtanh.pop %v465
        %v486 = vtanh.pop %v467
        %v487 = vtanh.pop %v471
        %v488 = vtanh.pop %v473
        %v489 = vld [vmem:[%s3] sm:$0xff]
        %v490 = vld [vmem:[%s3 + $0x8] sm:$0xff]
        %v491 = vld [vmem:[%s3 + $0x10] sm:$0xff]
        %v492 = vld [vmem:[%s3 + $0x18] sm:$0xff]
        %v493 = vld [vmem:[%s3 + $0x20] sm:$0xff]
        %v494 = vld [vmem:[%s3 + $0x28] sm:$0xff]
        %v495 = vld [vmem:[%s3 + $0x30] sm:$0x3]
        %v496 = vld [vmem:[%s4] sm:$0xff]
        %v497 = vld [vmem:[%s4 + $0x8] sm:$0xff]
        %v498 = vld [vmem:[%s4 + $0x10] sm:$0xff]
        %v499 = vld [vmem:[%s4 + $0x18] sm:$0xff]
        %v500 = vld [vmem:[%s4 + $0x20] sm:$0xff]
        %v501 = vld [vmem:[%s4 + $0x28] sm:$0xff]
        %v502 = vld [vmem:[%s4 + $0x30] sm:$0x3]
        %504 = vset.pattern.permute.xlu0 0
        %505 = vperm.xlu0 %504, %v496
        %v506 = vpop.permute.xlu0 %505
        %509 = vset.pattern.permute.xlu0 0
        %510 = vperm.xlu0 %509, %v497
        %v511 = vpop.permute.xlu0 %510
        %514 = vset.pattern.permute.xlu0 0
        %515 = vperm.xlu0 %514, %v498
        %v516 = vpop.permute.xlu0 %515
        %519 = vset.pattern.permute.xlu0 0
        %520 = vperm.xlu0 %519, %v499
        %v521 = vpop.permute.xlu0 %520
        %524 = vset.pattern.permute.xlu0 0
        %525 = vperm.xlu0 %524, %v500
        %v526 = vpop.permute.xlu0 %525
        %529 = vset.pattern.permute.xlu0 0
        %530 = vperm.xlu0 %529, %v501
        %v531 = vpop.permute.xlu0 %530
        %534 = vset.pattern.permute.xlu0 0
        %535 = vperm.xlu0 %534, %v502
        %v536 = vpop.permute.xlu0 %535
        %vm538 = vcmask 408576
        %v540 = vsel %vm538, %v489, 0
        %v543 = vsel %vm538, %v490, 0
        %v546 = vsel %vm538, %v491, 0
        %v549 = vsel %vm538, %v492, 0
        %v552 = vsel %vm538, %v493, 0
        %v555 = vsel %vm538, %v494, 0
        %v558 = vsel %vm538, %v495, 0
        %v561 = vsel %vm363, %v487, 0
        %v564 = vsel %vm363, %v488, 0
        %566 = vmatprep.subr.mxu0 0.0
        %567 = vmatpush1.msra.mxu0 0.0
        %568 = vmatprep.subr.mxu0 0.0
        %569 = vmatpush1.msra.mxu0 0.0
        %570 = vmatprep.subr.mxu0 0.0
        %571 = vmatpush1.msra.mxu0 0.0
        %572 = vmatprep.subr.mxu0 0.0
        %573 = vmatpush1.msra.mxu0 0.0
        %574 = vmatprep.subr.mxu0 0.0
        %575 = vmatpush1.msra.mxu0 0.0
        %576 = vmatprep.subr.mxu0 0.0
        %577 = vmatpush1.msra.mxu0 0.0
        %578 = vmatprep.subr.mxu0 0.0
        %579 = vmatpush1.msra.mxu0 0.0
        %580 = vmatprep.subr.mxu0 0.0
        %581 = vmatpush1.msra.mxu0 0.0
        %582 = vmatprep.subr.mxu0 0.0
        %583 = vmatpush1.msra.mxu0 0.0
        %584 = vmatprep.subr.mxu0 %v564
        %585 = vmatpush1.msra.mxu0 %v561
        %586 = vmatprep.subr.mxu0 %v486
        %587 = vmatpush1.msra.mxu0 %v485
        %588 = vmatprep.subr.mxu0 %v484
        %589 = vmatpush1.msra.mxu0 %v483
        %590 = vmatprep.subr.mxu0 %v482
        %591 = vmatpush1.msra.mxu0 %v481
        %592 = vmatprep.subr.mxu0 %v480
        %593 = vmatpush1.msra.mxu0 %v479
        %594 = vmatprep.subr.mxu0 %v478
        %595 = vmatpush1.msra.mxu0 %v477
        %596 = vmatprep.subr.mxu0 %v476
        %597 = vmatpush1.msra.mxu0 %v475
        %598 = vmatprep.subr.mxu0 0.0
        %599 = vmatpush2.msra.mxu0 0.0
        %600 = vmatprep.subr.mxu0 0.0
        %601 = vmatpush2.msra.mxu0 0.0
        %602 = vmatprep.subr.mxu0 0.0
        %603 = vmatpush2.msra.mxu0 0.0
        %604 = vmatprep.subr.mxu0 0.0
        %605 = vmatpush2.msra.mxu0 0.0
        %606 = vmatprep.subr.mxu0 0.0
        %607 = vmatpush2.msra.mxu0 0.0
        %608 = vmatprep.subr.mxu0 0.0
        %609 = vmatpush2.msra.mxu0 0.0
        %610 = vmatprep.subr.mxu0 0.0
        %611 = vmatpush2.msra.mxu0 0.0
        %612 = vmatprep.subr.mxu0 0.0
        %613 = vmatpush2.msra.mxu0 0.0
        %614 = vmatprep.subr.mxu0 0.0
        %615 = vmatpush2.msra.mxu0 0.0
        %616 = vmatprep.subr.mxu0 0.0
        %617 = vmatpush2.msra.mxu0 0.0
        %618 = vmatprep.subr.mxu0 0.0
        %619 = vmatpush2.msra.mxu0 0.0
        %620 = vmatprep.subr.mxu0 0.0
        %621 = vmatpush2.msra.mxu0 0.0
        %622 = vmatprep.subr.mxu0 0.0
        %623 = vmatpush2.msra.mxu0 0.0
        %624 = vmatprep.subr.mxu0 0.0
        %625 = vmatpush2.msra.mxu0 0.0
        %626 = vmatprep.subr.mxu0 0.0
        %627 = vmatpush2.msra.mxu0 0.0
        %628 = vmatprep.subr.mxu0 0.0
        %629 = vmatpush2.msra.mxu0 0.0
        %630 = vmatprep.mubr.f32.mxu0 0.0
        %631 = vmatmul.mubr.f32.gmra.mxu0 %v540
        %v632 = vpop.f32.mrf.mxu0
        %v633 = vadd.f32 %v506, %v632
        %v634 = vpop.f32.mrf.mxu0
        %v635 = vadd.f32 %v506, %v634
        %636 = vmatprep.mubr.f32.mxu0 0.0
        %637 = vmatmul.mubr.f32.gmra.mxu0 %v543
        %v638 = vpop.f32.mrf.mxu0
        %v639 = vadd.f32 %v511, %v638
        %v640 = vpop.f32.mrf.mxu0
        %v641 = vadd.f32 %v511, %v640
        %642 = vmatprep.mubr.f32.mxu0 0.0
        %643 = vmatmul.mubr.f32.gmra.mxu0 %v546
        %v644 = vpop.f32.mrf.mxu0
        %v645 = vadd.f32 %v516, %v644
        %v646 = vpop.f32.mrf.mxu0
        %v647 = vadd.f32 %v516, %v646
        %648 = vmatprep.mubr.f32.mxu0 0.0
        %649 = vmatmul.mubr.f32.gmra.mxu0 %v549
        %v650 = vpop.f32.mrf.mxu0
        %v651 = vadd.f32 %v521, %v650
        %v652 = vpop.f32.mrf.mxu0
        %v653 = vadd.f32 %v521, %v652
        %654 = vmatprep.mubr.f32.mxu0 0.0
        %655 = vmatmul.mubr.f32.gmra.mxu0 %v552
        %v656 = vpop.f32.mrf.mxu0
        %v657 = vadd.f32 %v526, %v656
        %v658 = vpop.f32.mrf.mxu0
        %v659 = vadd.f32 %v526, %v658
        %660 = vmatprep.mubr.f32.mxu0 0.0
        %661 = vmatmul.mubr.f32.gmra.mxu0 %v555
        %v662 = vpop.f32.mrf.mxu0
        %v663 = vadd.f32 %v531, %v662
        %v664 = vpop.f32.mrf.mxu0
        %v665 = vadd.f32 %v531, %v664
        %666 = vmatprep.mubr.f32.mxu0 0.0
        %667 = vmatmul.mubr.f32.gmra.mxu0 %v558
        %v668 = vpop.f32.mrf.mxu0
        %v669 = vadd.f32 %v536, %v668
        %v670 = vpop.f32.mrf.mxu0
        %v671 = vadd.f32 %v536, %v670
        %672 = vdwg.mxu0
        %v673 = vtanh.pop %v633
        %v674 = vtanh.pop %v635
        %v675 = vtanh.pop %v639
        %v676 = vtanh.pop %v641
        %v677 = vtanh.pop %v645
        %v678 = vtanh.pop %v647
        %v679 = vtanh.pop %v651
        %v680 = vtanh.pop %v653
        %v681 = vtanh.pop %v657
        %v682 = vtanh.pop %v659
        %v683 = vtanh.pop %v663
        %v684 = vtanh.pop %v665
        %v685 = vtanh.pop %v669
        %v686 = vtanh.pop %v671
        %v687 = vld [vmem:[%s5] sm:$0x1]
        %v688 = vld [vmem:[#allocation2] sm:$0x1]
        %690 = vset.pattern.permute.xlu0 0
        %691 = vperm.xlu0 %690, %v688
        %v692 = vpop.permute.xlu0 %691
        %v694 = vlaneseq
        %v695 = vshrl.u32 %v694, 7
        %v696 = vsub.s32 0, %v695
        %v697 = vrot.slane %v692, %v696
        %v699 = vsel %vm538, %v687, 0
        %v702 = vsel %vm363, %v685, 0
        %v705 = vsel %vm363, %v686, 0
        %707 = vmatprep.subr.mxu0 0.0
        %708 = vmatpush1.msra.mxu0 0.0
        %709 = vmatprep.subr.mxu0 0.0
        %710 = vmatpush1.msra.mxu0 0.0
        %711 = vmatprep.subr.mxu0 0.0
        %712 = vmatpush1.msra.mxu0 0.0
        %713 = vmatprep.subr.mxu0 0.0
        %714 = vmatpush1.msra.mxu0 0.0
        %715 = vmatprep.subr.mxu0 0.0
        %716 = vmatpush1.msra.mxu0 0.0
        %717 = vmatprep.subr.mxu0 0.0
        %718 = vmatpush1.msra.mxu0 0.0
        %719 = vmatprep.subr.mxu0 0.0
        %720 = vmatpush1.msra.mxu0 0.0
        %721 = vmatprep.subr.mxu0 0.0
        %722 = vmatpush1.msra.mxu0 0.0
        %723 = vmatprep.subr.mxu0 0.0
        %724 = vmatpush1.msra.mxu0 0.0
        %725 = vmatprep.subr.mxu0 %v705
        %726 = vmatpush1.msra.mxu0 %v702
        %727 = vmatprep.subr.mxu0 %v684
        %728 = vmatpush1.msra.mxu0 %v683
        %729 = vmatprep.subr.mxu0 %v682
        %730 = vmatpush1.msra.mxu0 %v681
        %731 = vmatprep.subr.mxu0 %v680
        %732 = vmatpush1.msra.mxu0 %v679
        %733 = vmatprep.subr.mxu0 %v678
        %734 = vmatpush1.msra.mxu0 %v677
        %735 = vmatprep.subr.mxu0 %v676
        %736 = vmatpush1.msra.mxu0 %v675
        %737 = vmatprep.subr.mxu0 %v674
        %738 = vmatpush1.msra.mxu0 %v673
        %739 = vmatprep.subr.mxu0 0.0
        %740 = vmatpush2.msra.mxu0 0.0
        %741 = vmatprep.subr.mxu0 0.0
        %742 = vmatpush2.msra.mxu0 0.0
        %743 = vmatprep.subr.mxu0 0.0
        %744 = vmatpush2.msra.mxu0 0.0
        %745 = vmatprep.subr.mxu0 0.0
        %746 = vmatpush2.msra.mxu0 0.0
        %747 = vmatprep.subr.mxu0 0.0
        %748 = vmatpush2.msra.mxu0 0.0
        %749 = vmatprep.subr.mxu0 0.0
        %750 = vmatpush2.msra.mxu0 0.0
        %751 = vmatprep.subr.mxu0 0.0
        %752 = vmatpush2.msra.mxu0 0.0
        %753 = vmatprep.subr.mxu0 0.0
        %754 = vmatpush2.msra.mxu0 0.0
        %755 = vmatprep.subr.mxu0 0.0
        %756 = vmatpush2.msra.mxu0 0.0
        %757 = vmatprep.subr.mxu0 0.0
        %758 = vmatpush2.msra.mxu0 0.0
        %759 = vmatprep.subr.mxu0 0.0
        %760 = vmatpush2.msra.mxu0 0.0
        %761 = vmatprep.subr.mxu0 0.0
        %762 = vmatpush2.msra.mxu0 0.0
        %763 = vmatprep.subr.mxu0 0.0
        %764 = vmatpush2.msra.mxu0 0.0
        %765 = vmatprep.subr.mxu0 0.0
        %766 = vmatpush2.msra.mxu0 0.0
        %767 = vmatprep.subr.mxu0 0.0
        %768 = vmatpush2.msra.mxu0 0.0
        %769 = vmatprep.subr.mxu0 0.0
        %770 = vmatpush2.msra.mxu0 0.0
        %771 = vmatprep.mubr.f32.mxu0 0.0
        %772 = vmatmul.mubr.f32.gmra.mxu0 %v699
        %v773 = vpop.f32.mrf.mxu0
        %v774 = vadd.f32 %v697, %v773
        %v775 = vpop.f32.mrf.mxu0
        %v776 = vadd.f32 %v697, %v775
        %777 = vdwg.mxu0
        %v778 = vmin.f32 %v774, 20.0
        %v779 = vmin.f32 %v776, 20.0
        %vm780 = vcmp.gt.f32.partialorder %v774, 20.0
        %vm781 = vcmp.gt.f32.partialorder %v776, 20.0
        %v782 = vmul.f32 %v778, 1.442695
        %v783 = vpow.pop %v782
        %v784 = vmul.f32 %v779, 1.442695
        %v785 = vpow.pop %v784
        %v786 = vadd.f32 %v783, 1.0
        %v787 = vlog2.pop %v786
        %v788 = vmul.f32 %v787, 0.6931472
        %v789 = vmul.f32 -0.5, %v783
        %v790 = vadd.f32 %v789, 1.0
        %v791 = vmul.f32 %v790, %v783
        %v792 = vand.u32 2147483647, %v783
        %vm793 = vcmp.lt.f32.partialorder %v792, 0.0004427343
        %v794 = vsel %vm793, %v791, %v788
        %v795 = vadd.f32 %v785, 1.0
        %v796 = vlog2.pop %v795
        %v797 = vmul.f32 %v796, 0.6931472
        %v798 = vmul.f32 -0.5, %v785
        %v799 = vadd.f32 %v798, 1.0
        %v800 = vmul.f32 %v799, %v785
        %v801 = vand.u32 2147483647, %v785
        %vm802 = vcmp.lt.f32.partialorder %v801, 0.0004427343
        %v803 = vsel %vm802, %v800, %v797
        %v804 = vsel %vm780, %v774, %v794
        %v805 = vsel %vm781, %v776, %v803
        %v808 = vcombine.low %v804, %v805
        %v810 = vunpack.c.l.s4 1966171168
        %v811 = vunpack.c.0.s8 %v810
        %v812 = vlaneseq
        %v813 = vshrl.u32 %v812, 7
        %v814 = vsub.s32 %v811, %v813
        %v815 = vrot.slane %v808, %v814
        %v817 = vunpack.c.l.s4 1966171168
        %v818 = vunpack.c.0.s8 %v817
        %v819 = vlaneseq
        %v820 = vshrl.u32 %v819, 7
        %v821 = vsub.s32 %v818, %v820
        %v822 = vrot.slane %v815, %v821
        %v824 = vlaneseq
        %vm825 = vcmp.ge.s32.totalorder %v824, 0
        %vm826 = vcmp.lt.s32.totalorder %v824, 256
        %vm827 = vmand %vm825, %vm826
        %828 = vst.msk [vmem:[%s274] sm:$0x3] %vm827, %v822
        %s829 = sand.u32 %s183, 1
        %s830 = scalar_lea.sflag [#allocation4], %s829
        %s831 = sand.u32 %s183, 1
        %s832 = smul.addr %s831, 2
        %s833 = scalar_lea.vmem [#allocation3], %s832
        // Predicated region
        $region49: #{speed_nn.1} parent=47 // pred_check
          %p834 = pneg %p193
        $region50: #{speed_nn.1} parent=47 // pred_check_branch
          %836 = sbr.rel (%p834) target = $region52
        $region51: #{speed_nn.1} parent=47 // pred_region
          %s837 = smul.u32 2, %s23
          %s839 = ssub.s32 32, 32
          %840 = vsyncadd %s830, %s839
          %s841 = smul.addr %s837, 16
          %s842 = scalar_lea.hbm %s7, %s841
          %s844 = sshll.u32 %s833, 4
          %s845 = int_to_ptr.vmem [resolvable:$true] %s844
          %847 = dma.vmem_to_hbm [thread:$0]  %s845, 32, %s842, %s830
        $region52: #{speed_nn.1} parent=47 // pred_fallthru
          _
      $region48: #{speed_nn.1} parent=5 // pred_fallthru
        _
      %p848 = scmp.le.s32.totalorder 2, %s18
      // Predicated region
      $region53: #{speed_nn.1} parent=5 // pred_check
        %p849 = pneg %p848
      $region54: #{speed_nn.1} parent=5 // pred_check_branch
        %851 = sbr.rel (%p849) target = $region56
      $region55: #{speed_nn.1} parent=5 // pred_region
        %s852 = ssub.s32 %s18, 2
        // Predicated region
        $region57: #{speed_nn.1} parent=55 // pred_check
          %p853 = pneg %p199
        $region58: #{speed_nn.1} parent=55 // pred_check_branch
          %855 = sbr.rel (%p853) target = $region60
        $region59: #{speed_nn.1} parent=55 // pred_region
          %s856 = sand.u32 %s184, 1
          %s857 = scalar_lea.sflag [#allocation4], %s856
          %s858 = sand.u32 %s184, 1
          %s859 = smul.addr %s858, 2
          %s860 = scalar_lea.vmem [#allocation3], %s859
          %861 = dma.done %s857, 32
        $region60: #{speed_nn.1} parent=55 // pred_fallthru
          _
      $region56: #{speed_nn.1} parent=5 // pred_fallthru
        _
    $region6: #{speed_nn.1} parent=1 // loop_footer
      %s22 = sadd.s32 1, %s18
    $region7: #{speed_nn.1} parent=1 // loop_footer_branch
      %17 = sbr.rel target = $region3
    $region8: #{speed_nn.1} parent=1 // loop_exit
      _
    %862 = vsyncpa [#allocation4], 1
    %s863 = scalar_lea.sflag [#allocation4], 1
    %864 = vsyncpa %s863, 1

</llo_original>
